<compile_context>
chip_gen: v7x
topology: tpu7x:2x2x1
jax: 0.10.0
libtpu: 0.0.40
codegen_flags: <defaults>
</compile_context>

<pallas_src>
import math

import jax
import jax.numpy as jnp
from jax.experimental import pallas as pl
from jax.experimental.pallas import tpu as pltpu


# ----------------------------------------------------------------------------
# Kernel
# ----------------------------------------------------------------------------
def _gmm_body(first_ref, last_ref, lo_ref, hi_ref,
              x_ref, w_ref, b_ref, o_ref, acc_ref):
    t = pl.program_id(1)          # work-item (token tile x expert visit) axis
    k = pl.program_id(2)          # contraction tile axis
    nk = pl.num_programs(2)

    tm = acc_ref.shape[0]
    lo = lo_ref[t]
    hi = hi_ref[t]
    is_real = hi > lo                      # padding steps have lo == hi == 0
    is_interior = (lo == 0) & (hi == tm)   # tile fully owned by this expert

    # Zero the accumulator on the first expert visit to this token tile.
    # (Pad steps always alias an already-visited tile, so first == 0 there.)
    @pl.when((first_ref[t] == 1) & (k == 0))
    def _():
        acc_ref[...] = jnp.zeros_like(acc_ref)

    # Hot path: one MXU matmul per *real* (token tile, k tile) step. Padding
    # steps of the static T = tiles_m + E - 1 upper bound skip all compute.
    @pl.when(is_real)
    def _():
        y = jnp.dot(x_ref[...], w_ref[...], preferred_element_type=jnp.float32)

        # Interior fast path: no (tm, tn) row-mask select, straight accumulate.
        @pl.when(is_interior)
        def _():
            acc_ref[...] += y
            if b_ref is not None:
                @pl.when(k == nk - 1)
                def _():
                    acc_ref[...] += b_ref[0].astype(jnp.float32)

        # Boundary tiles (expert boundary inside the tile, or the ragged
        # final tile): mask rows not owned by this step's expert.
        @pl.when(jnp.logical_not(is_interior))
        def _():
            rows = jax.lax.broadcasted_iota(jnp.int32, (tm, 1), 0)
            mask = (rows >= lo) & (rows < hi)
            acc_ref[...] += jnp.where(mask, y, 0.0)
            if b_ref is not None:
                @pl.when(k == nk - 1)
                def _():
                    acc_ref[...] += jnp.where(
                        mask, b_ref[0].astype(jnp.float32), 0.0)

    # Writeback once per output tile: last visit, last k step.  Deliberately
    # NOT gated by `is_real`: when padding steps alias the final token tile,
    # its `last` flag rides on the final pad step (acc is untouched by pads).
    @pl.when((last_ref[t] == 1) & (k == nk - 1))
    def _():
        o_ref[...] = acc_ref[...].astype(o_ref.dtype)


def _kernel_with_bias(w_ids_ref, m_ids_ref, first_ref, last_ref, lo_ref, hi_ref,
                      x_ref, w_ref, b_ref, o_ref, acc_ref):
    del w_ids_ref, m_ids_ref  # only used by index_maps
    _gmm_body(first_ref, last_ref, lo_ref, hi_ref, x_ref, w_ref, b_ref, o_ref, acc_ref)


def _kernel_no_bias(w_ids_ref, m_ids_ref, first_ref, last_ref, lo_ref, hi_ref,
                    x_ref, w_ref, o_ref, acc_ref):
    del w_ids_ref, m_ids_ref
    _gmm_body(first_ref, last_ref, lo_ref, hi_ref, x_ref, w_ref, None, o_ref, acc_ref)


# ----------------------------------------------------------------------------
# Metadata (pure JAX, computed on device from the dynamic expert_size)
# ----------------------------------------------------------------------------
def _make_group_metadata(expert_size, tm, tiles_m, num_experts):
    """Per-grid-step scalars for the grouped matmul.

    Returns int32 arrays of static length T = tiles_m + num_experts - 1:
      w_ids  : expert index whose weight block this step uses
      m_ids  : token-tile index this step touches
      first  : 1 if this step is the first expert visit to its token tile
      last   : 1 if this step is the last expert visit to its token tile
      lo, hi : in-tile row range [lo, hi) owned by this step's expert
               (lo == hi for padding steps -> contributes zero)
    """
    es = expert_size.astype(jnp.int32)
    ends = jnp.cumsum(es)
    starts = jnp.concatenate([jnp.zeros((1,), jnp.int32), ends[:-1]])

    first_tile = starts // tm
    last_tile_excl = (ends + tm - 1) // tm
    group_tiles = jnp.where(es > 0, last_tile_excl - first_tile, 0).astype(jnp.int32)

    T = tiles_m + num_experts - 1
    step = jnp.arange(T, dtype=jnp.int32)
    num_real = jnp.sum(group_tiles)
    is_pad = step >= num_real

    w_ids = jnp.repeat(jnp.arange(num_experts, dtype=jnp.int32), group_tiles,
                       total_repeat_length=T)
    tiles_before = jnp.concatenate(
        [jnp.zeros((1,), jnp.int32), jnp.cumsum(group_tiles)[:-1]])
    local = step - tiles_before[w_ids]
    m_ids = first_tile[w_ids] + local
    m_ids = jnp.where(is_pad, tiles_m - 1, m_ids).astype(jnp.int32)

    lo = jnp.maximum(starts[w_ids] - m_ids * tm, 0)
    hi = jnp.minimum(ends[w_ids] - m_ids * tm, tm)
    lo = jnp.where(is_pad, 0, lo).astype(jnp.int32)
    hi = jnp.where(is_pad, 0, hi).astype(jnp.int32)

    prev_m = jnp.concatenate([jnp.full((1,), -1, jnp.int32), m_ids[:-1]])
    next_m = jnp.concatenate([m_ids[1:], jnp.full((1,), -1, jnp.int32)])
    first = (m_ids != prev_m).astype(jnp.int32)
    last = (m_ids != next_m).astype(jnp.int32)

    return w_ids, m_ids, first, last, lo, hi


# ----------------------------------------------------------------------------
# Tile selection
# ----------------------------------------------------------------------------
def _round_up(x, m):
    return ((x + m - 1) // m) * m


def _pick_tile(dim, target):
    """Largest "nice" tile <= target that divides dim.

    Prefers multiples of 256 (full MXU pass on v6e/v7x 256x256 MXUs), then
    multiples of 128; falls back to the full dimension (always legal).
    """
    if dim <= target:
        return dim
    for quantum in (256, 128):
        t = (min(target, dim) // quantum) * quantum
        while t >= quantum:
            if dim % t == 0:
                return t
            t -= quantum
    return dim


def _default_tile_config():
    """Generation-aware (tm, tk, tn, vmem_limit_bytes, min_n_blocks).

    tm is the primary knob: arithmetic intensity w.r.t. the expert-weight
    stream is ~tm FLOPs/byte (bf16), so it must clear the HBM ridge
    (~240 v5e, ~310 v7x, ~680 v6e FLOPs/byte) for the MXU to saturate.
    """
    try:
        kind = jax.devices()[0].device_kind.lower()
    except Exception:
        kind = ""
    if "v7" in kind:
        # 64 MiB VMEM per TensorCore, 2 TCs/chip -> keep grid_n >= 2.
        return 512, 1024, 1024, 48 * 1024 * 1024, 2
    if "v6" in kind or "trillium" in kind:
        # Most bandwidth-skewed chip -> biggest token tile.
        return 768, 1024, 1024, 96 * 1024 * 1024, 1
    if "v5 lite" in kind or "v5lite" in kind or "v5e" in kind:
        return 256, 512, 512, 64 * 1024 * 1024, 1
    return 512, 1024, 1024, 64 * 1024 * 1024, 1


# ----------------------------------------------------------------------------
# Wrapper (equivalent of ParallelLinear.forward)
# ----------------------------------------------------------------------------
def parallel_experts_forward(inputs, expert_size, w, b=None, *,
                             tm=None, tk=None, tn=None,
                             compute_dtype=jnp.bfloat16,
                             vmem_limit_bytes=None,
                             w_buffers=2):
    """Grouped linear: rows of `inputs` are contiguous per expert, with
    per-expert row counts given by `expert_size` (sum must equal n_tokens).
    """
    n_tokens, in_size = inputs.shape
    num_experts, w_in, out_size = w.shape
    assert w_in == in_size
    if n_tokens == 0:
        return jnp.zeros((0, out_size), inputs.dtype)

    d_tm, d_tk, d_tn, d_vmem, min_n_blocks = _default_tile_config()
    tm = d_tm if tm is None else tm
    tk = d_tk if tk is None else tk
    tn = d_tn if tn is None else tn
    vmem_limit_bytes = d_vmem if vmem_limit_bytes is None else vmem_limit_bytes

    # Token tile: multiple of 16 (bf16 sublane packing), capped by the
    # rounded-up token count so tiny batches don't pay for a huge tile.
    tm = max(16, tm - tm % 16)
    tm = min(tm, _round_up(n_tokens, 16))
    n_pad = pl.cdiv(n_tokens, tm) * tm
    tiles_m = n_pad // tm
    pad = n_pad - n_tokens

    out_dtype = inputs.dtype
    if compute_dtype is not None:
        inputs = inputs.astype(compute_dtype)
        w = w.astype(compute_dtype)
        if b is not None:
            b = b.astype(compute_dtype)

    # TODO(synk): the pad / final slice are two extra HBM passes; feed a
    # pre-padded token dim (and consume the padded output) to avoid them.
    x_p = jnp.pad(inputs, ((0, pad), (0, 0))) if pad else inputs

    tk = _pick_tile(in_size, tk)
    # On multi-TensorCore chips make sure the (only) parallel axis gets >= 2
    # programs when out_size permits, so both cores have work.
    tn_target = tn
    if min_n_blocks > 1 and out_size >= min_n_blocks * 128:
        tn_target = min(tn_target, max(128, out_size // min_n_blocks))
    tn = _pick_tile(out_size, tn_target)
    grid_k = in_size // tk
    grid_n = out_size // tn

    w_ids, m_ids, first, last, lo, hi = _make_group_metadata(
        expert_size, tm, tiles_m, num_experts)

    T = tiles_m + num_experts - 1   # static upper bound on work items

    # index_maps receive (n, t, k, *scalar_prefetch_refs).
    x_spec = pl.BlockSpec((tm, tk), lambda n, t, k, wi, mi, *_: (mi[t], k))
    w_map = lambda n, t, k, wi, mi, *_: (wi[t], k, n)
    if w_buffers > 2:
        # Deeper buffering on the dominant (weight) DMA stream.
        w_spec = pl.BlockSpec((pl.Squeezed(), tk, tn), w_map,
                              pipeline_mode=pl.Buffered(w_buffers))
    else:
        w_spec = pl.BlockSpec((pl.Squeezed(), tk, tn), w_map)
    o_spec = pl.BlockSpec((tm, tn), lambda n, t, k, wi, mi, *_: (mi[t], n))

    in_specs = [x_spec, w_spec]
    operands = [x_p, w]
    kernel = _kernel_no_bias
    if b is not None:
        b_spec = pl.BlockSpec((1, tn), lambda n, t, k, wi, mi, *_: (wi[t], n))
        in_specs.append(b_spec)
        operands.append(b)
        kernel = _kernel_with_bias

    out = pl.pallas_call(
        kernel,
        out_shape=jax.ShapeDtypeStruct((n_pad, out_size), out_dtype),
        grid_spec=pltpu.PrefetchScalarGridSpec(
            num_scalar_prefetch=6,
            grid=(grid_n, T, grid_k),
            in_specs=in_specs,
            out_specs=o_spec,
            scratch_shapes=[pltpu.VMEM((tm, tn), jnp.float32)],
        ),
        compiler_params=pltpu.CompilerParams(
            # n axis independent -> shards across TensorCores on 2-TC chips.
            dimension_semantics=("parallel", "arbitrary", "arbitrary"),
            vmem_limit_bytes=vmem_limit_bytes,
        ),
    )(w_ids, m_ids, first, last, lo, hi, *operands)

    return out if pad == 0 else out[:n_tokens]


def init_parallel_experts(key, num_experts, input_size, output_size, bias=False,
                          dtype=jnp.float32):
    """Matches ParallelExperts.__init__ / reset_parameters."""
    std = math.sqrt(2.0 / float(input_size + output_size))
    a = math.sqrt(3.0) * std
    w = jax.random.uniform(
        key, (num_experts, input_size, output_size), dtype=dtype, minval=-a, maxval=a
    )
    b = jnp.zeros((num_experts, output_size), dtype=dtype) if bias else None
    return w, b


if __name__ == "__main__":
    key = jax.random.PRNGKey(0)
    k_w, k_b, k_x = jax.random.split(key, 3)

    num_experts, input_size, output_size = 4, 256, 256
    # Includes an empty expert, an expert aligned to a full 128-row tile
    # (interior fast path) and unaligned experts (boundary / masked path).
    expert_size = jnp.array([128, 0, 96, 32], dtype=jnp.int32)  # sums to 256
    n_tokens = int(expert_size.sum())

    w, _ = init_parallel_experts(k_w, num_experts, input_size, output_size, bias=False)
    b = 0.1 * jax.random.normal(k_b, (num_experts, output_size), dtype=jnp.float32)
    inputs = jax.random.normal(k_x, (n_tokens, input_size), dtype=jnp.float32)

    # Pure-JAX reference in the kernel's numerics: bf16 operands, f32 accum.
    xc = inputs.astype(jnp.bfloat16).astype(jnp.float32)
    wc = w.astype(jnp.bfloat16).astype(jnp.float32)
    bc = b.astype(jnp.bfloat16).astype(jnp.float32)
    eid = jnp.repeat(jnp.arange(num_experts), expert_size,
                     total_repeat_length=n_tokens)
    ref_nb = jnp.einsum("tk,tkn->tn", xc, wc[eid])
    ref_b = ref_nb + bc[eid]

    # 1) Small explicit tiles: exercises the K / N grid axes, boundary tiles,
    #    the interior fast path and padding steps.
    out_nb = parallel_experts_forward(inputs, expert_size, w, None,
                                      tm=128, tk=128, tn=128)
    out_b = parallel_experts_forward(inputs, expert_size, w, b,
                                     tm=128, tk=128, tn=128)
    # 2) Generation-aware default tiles (the production path).
    out_auto = parallel_experts_forward(inputs, expert_size, w, b)

    out_nb, out_b, out_auto = jax.block_until_ready((out_nb, out_b, out_auto))

    assert out_nb.shape == (n_tokens, output_size)
    assert jnp.allclose(out_nb, ref_nb, atol=2e-3, rtol=2e-3), "no-bias mismatch"
    assert jnp.allclose(out_b, ref_b, atol=2e-3, rtol=2e-3), "bias mismatch"
    assert jnp.allclose(out_auto, ref_b, atol=2e-3, rtol=2e-3), "auto-tile mismatch"

    print("KERNEL_OK")
</pallas_src>

<mosaic_0001>
module attributes {stable_mosaic.version = 11 : i64} {
  func.func @_kernel_no_bias(%arg0: i32, %arg1: i32, %arg2: i32, %arg3: memref<5xi32, #tpu.memory_space<smem>>, %arg4: memref<5xi32, #tpu.memory_space<smem>>, %arg5: memref<5xi32, #tpu.memory_space<smem>>, %arg6: memref<5xi32, #tpu.memory_space<smem>>, %arg7: memref<5xi32, #tpu.memory_space<smem>>, %arg8: memref<5xi32, #tpu.memory_space<smem>>, %arg9: memref<128x128xbf16, #tpu.memory_space<vmem>>, %arg10: memref<1x128x128xbf16, #tpu.memory_space<vmem>>, %arg11: memref<128x128xf32, #tpu.memory_space<vmem>>, %arg12: memref<128x128xf32, #tpu.memory_space<vmem>>) attributes {dimension_semantics = [#tpu.dimension_semantics<parallel>, #tpu.dimension_semantics<arbitrary>, #tpu.dimension_semantics<arbitrary>], iteration_bounds = array<i64: 2, 5, 2>, scalar_prefetch = 6 : i64, scratch_operands = 1 : i64, tpu.core_type = #tpu.core_type<tc>, window_params = [{transform_indices = @transform_0, window_bounds = array<i64: 128, 128>}, {transform_indices = @transform_1, window_bounds = array<i64: 1, 128, 128>}, {transform_indices = @transform_2, window_bounds = array<i64: 128, 128>}]} {
    %0 = arith.index_cast %arg1 : i32 to index
    %1 = memref.load %arg7[%0] : memref<5xi32, #tpu.memory_space<smem>>
    %2 = arith.index_cast %arg1 : i32 to index
    %3 = memref.load %arg8[%2] : memref<5xi32, #tpu.memory_space<smem>>
    %4 = arith.cmpi sgt, %3, %1 : i32
    %c0_i32 = arith.constant 0 : i32
    %5 = arith.cmpi eq, %1, %c0_i32 : i32
    %c128_i32 = arith.constant 128 : i32
    %6 = arith.cmpi eq, %3, %c128_i32 : i32
    %7 = arith.andi %5, %6 : i1
    %8 = arith.index_cast %arg1 : i32 to index
    %9 = memref.load %arg5[%8] : memref<5xi32, #tpu.memory_space<smem>>
    %c1_i32 = arith.constant 1 : i32
    %10 = arith.cmpi eq, %9, %c1_i32 : i32
    %c0_i32_0 = arith.constant 0 : i32
    %11 = arith.cmpi eq, %arg2, %c0_i32_0 : i32
    %12 = arith.andi %10, %11 : i1
    %13 = arith.extui %12 : i1 to i32
    %c0_i32_1 = arith.constant 0 : i32
    %14 = arith.cmpi ne, %13, %c0_i32_1 : i32
    scf.if %14 {
      %cst = arith.constant 0.000000e+00 : f32
      %24 = vector.broadcast %cst : f32 to vector<128x128xf32>
      %c0 = arith.constant 0 : index
      %c0_6 = arith.constant 0 : index
      %25 = vector.load %arg12[%c0, %c0_6] : memref<128x128xf32, #tpu.memory_space<vmem>>, vector<128x128xf32>
      tpu.vector_store %arg12[%c0, %c0_6], %24 {strides = array<i32>} : memref<128x128xf32, #tpu.memory_space<vmem>>, vector<128x128xf32>,
    } else {
    }
    %15 = arith.extui %4 : i1 to i32
    %c0_i32_2 = arith.constant 0 : i32
    %16 = arith.cmpi ne, %15, %c0_i32_2 : i32
    scf.if %16 {
      %c0 = arith.constant 0 : index
      %c0_6 = arith.constant 0 : index
      %24 = vector.load %arg9[%c0, %c0_6] : memref<128x128xbf16, #tpu.memory_space<vmem>>, vector<128x128xbf16>
      %c0_7 = arith.constant 0 : index
      %c0_8 = arith.constant 0 : index
      %c0_9 = arith.constant 0 : index
      %25 = vector.load %arg10[%c0_7, %c0_8, %c0_9] : memref<1x128x128xbf16, #tpu.memory_space<vmem>>, vector<1x128x128xbf16>
      %26 = vector.shape_cast %25 : vector<1x128x128xbf16> to vector<128x128xbf16>
      %cst = arith.constant dense<0.000000e+00> : vector<128x128xf32>
      %27 = tpu.matmul %24, %26, %cst {dimension_numbers = #tpu.dot_dimension_numbers<[1], [0], [0], [1], [0, 0, 1, 1], [], []>} : vector<128x128xbf16>, vector<128x128xbf16>, vector<128x128xf32> -> vector<128x128xf32>
      %28 = arith.extui %7 : i1 to i32
      %c0_i32_10 = arith.constant 0 : i32
      %29 = arith.cmpi ne, %28, %c0_i32_10 : i32
      scf.if %29 {
        %c0_12 = arith.constant 0 : index
        %c0_13 = arith.constant 0 : index
        %33 = vector.load %arg12[%c0_12, %c0_13] : memref<128x128xf32, #tpu.memory_space<vmem>>, vector<128x128xf32>
        %34 = arith.addf %33, %27 : vector<128x128xf32>
        %c0_14 = arith.constant 0 : index
        %c0_15 = arith.constant 0 : index
        %35 = vector.load %arg12[%c0_14, %c0_15] : memref<128x128xf32, #tpu.memory_space<vmem>>, vector<128x128xf32>
        tpu.vector_store %arg12[%c0_14, %c0_15], %34 {strides = array<i32>} : memref<128x128xf32, #tpu.memory_space<vmem>>, vector<128x128xf32>,
      } else {
      }
      %true = arith.constant true
      %30 = arith.xori %7, %true : i1
      %31 = arith.extui %30 : i1 to i32
      %c0_i32_11 = arith.constant 0 : i32
      %32 = arith.cmpi ne, %31, %c0_i32_11 : i32
      scf.if %32 {
        %33 = tpu.iota {dimensions = array<i32: 0>} : vector<128x1xi32>
        %34 = vector.broadcast %1 : i32 to vector<128x1xi32>
        %35 = arith.cmpi sge, %33, %34 : vector<128x1xi32>
        %36 = vector.broadcast %3 : i32 to vector<128x1xi32>
        %37 = arith.cmpi slt, %33, %36 : vector<128x1xi32>
        %38 = arith.andi %35, %37 : vector<128x1xi1>
        %c0_12 = arith.constant 0 : index
        %c0_13 = arith.constant 0 : index
        %39 = vector.load %arg12[%c0_12, %c0_13] : memref<128x128xf32, #tpu.memory_space<vmem>>, vector<128x128xf32>
        %cst_14 = arith.constant 0.000000e+00 : f32
        %40 = vector.shape_cast %38 : vector<128x1xi1> to vector<128x1xi1>
        %41 = vector.broadcast %40 : vector<128x1xi1> to vector<128x128xi1>
        %42 = vector.broadcast %cst_14 : f32 to vector<128x128xf32>
        %43 = arith.select %41, %27, %42 : vector<128x128xi1>, vector<128x128xf32>
        %44 = arith.addf %39, %43 : vector<128x128xf32>
        %c0_15 = arith.constant 0 : index
        %c0_16 = arith.constant 0 : index
        %45 = vector.load %arg12[%c0_15, %c0_16] : memref<128x128xf32, #tpu.memory_space<vmem>>, vector<128x128xf32>
        tpu.vector_store %arg12[%c0_15, %c0_16], %44 {strides = array<i32>} : memref<128x128xf32, #tpu.memory_space<vmem>>, vector<128x128xf32>,
      } else {
      }
    } else {
    }
    %17 = arith.index_cast %arg1 : i32 to index
    %18 = memref.load %arg6[%17] : memref<5xi32, #tpu.memory_space<smem>>
    %c1_i32_3 = arith.constant 1 : i32
    %19 = arith.cmpi eq, %18, %c1_i32_3 : i32
    %c1_i32_4 = arith.constant 1 : i32
    %20 = arith.cmpi eq, %arg2, %c1_i32_4 : i32
    %21 = arith.andi %19, %20 : i1
    %22 = arith.extui %21 : i1 to i32
    %c0_i32_5 = arith.constant 0 : i32
    %23 = arith.cmpi ne, %22, %c0_i32_5 : i32
    scf.if %23 {
      %c0 = arith.constant 0 : index
      %c0_6 = arith.constant 0 : index
      %24 = vector.load %arg12[%c0, %c0_6] : memref<128x128xf32, #tpu.memory_space<vmem>>, vector<128x128xf32>
      %c0_7 = arith.constant 0 : index
      %c0_8 = arith.constant 0 : index
      %25 = vector.load %arg11[%c0_7, %c0_8] : memref<128x128xf32, #tpu.memory_space<vmem>>, vector<128x128xf32>
      tpu.vector_store %arg11[%c0_7, %c0_8], %24 {strides = array<i32>} : memref<128x128xf32, #tpu.memory_space<vmem>>, vector<128x128xf32>,
    } else {
    }
    return
  }
  func.func @transform_0(%arg0: i32, %arg1: i32, %arg2: i32, %arg3: memref<5xi32, #tpu.memory_space<smem>>, %arg4: memref<5xi32, #tpu.memory_space<smem>>, %arg5: memref<5xi32, #tpu.memory_space<smem>>, %arg6: memref<5xi32, #tpu.memory_space<smem>>, %arg7: memref<5xi32, #tpu.memory_space<smem>>, %arg8: memref<5xi32, #tpu.memory_space<smem>>) -> (i32, i32) {
    %0 = arith.index_cast %arg1 : i32 to index
    %1 = memref.load %arg4[%0] : memref<5xi32, #tpu.memory_space<smem>>
    %c0_i32 = arith.constant 0 : i32
    return %1, %arg2 : i32, i32
  }
  func.func @transform_1(%arg0: i32, %arg1: i32, %arg2: i32, %arg3: memref<5xi32, #tpu.memory_space<smem>>, %arg4: memref<5xi32, #tpu.memory_space<smem>>, %arg5: memref<5xi32, #tpu.memory_space<smem>>, %arg6: memref<5xi32, #tpu.memory_space<smem>>, %arg7: memref<5xi32, #tpu.memory_space<smem>>, %arg8: memref<5xi32, #tpu.memory_space<smem>>) -> (i32, i32, i32) {
    %0 = arith.index_cast %arg1 : i32 to index
    %1 = memref.load %arg3[%0] : memref<5xi32, #tpu.memory_space<smem>>
    %c0_i32 = arith.constant 0 : i32
    return %1, %arg2, %arg0 : i32, i32, i32
  }
  func.func @transform_2(%arg0: i32, %arg1: i32, %arg2: i32, %arg3: memref<5xi32, #tpu.memory_space<smem>>, %arg4: memref<5xi32, #tpu.memory_space<smem>>, %arg5: memref<5xi32, #tpu.memory_space<smem>>, %arg6: memref<5xi32, #tpu.memory_space<smem>>, %arg7: memref<5xi32, #tpu.memory_space<smem>>, %arg8: memref<5xi32, #tpu.memory_space<smem>>) -> (i32, i32) {
    %0 = arith.index_cast %arg1 : i32 to index
    %1 = memref.load %arg4[%0] : memref<5xi32, #tpu.memory_space<smem>>
    %c0_i32 = arith.constant 0 : i32
    return %1, %arg0 : i32, i32
  }
}

</mosaic_0001>

<llo_original>
// kernel: tpu_custom_call.1
$region0: #{tpu_custom_call.1}
  #allocation0 [shape = 'u32[]', space=smem, size = 0x4, offset = 0x4, fixed_abs, tag = 'smem constant byte address 0x4 - core index']
  #allocation1 [shape = 'u32[144,128]{1,0:T(1,128)}', space=vmem, size = 0x12000, scoped, tag = 'internal scratch']
  #allocation2 [shape = 'f32[128,128]{1,0:T(8,128)}', space=vmem, size = 0x10000, scoped, tag = 'scratch operand']
  #allocation3 [shape = 's32[1]{0}', space=sflag, size = 0x4, scoped, tag = 'scoped memory for tpu_custom_call.1']
  #allocation4 [shape = 'u8[512]{0}', space=smem, size = 0x200, scoped, tag = 'prefetched SMEM operand 0']
  #allocation5 [shape = 'u8[512]{0}', space=smem, size = 0x200, scoped, tag = 'prefetched SMEM operand 1']
  #allocation6 [shape = 'u8[512]{0}', space=smem, size = 0x200, scoped, tag = 'prefetched SMEM operand 2']
  #allocation7 [shape = 'u8[512]{0}', space=smem, size = 0x200, scoped, tag = 'prefetched SMEM operand 3']
  #allocation8 [shape = 'u8[512]{0}', space=smem, size = 0x200, scoped, tag = 'prefetched SMEM operand 4']
  #allocation9 [shape = 'u8[512]{0}', space=smem, size = 0x200, scoped, tag = 'prefetched SMEM operand 5']
  %s0 = inlined_call_operand.hbm [shape: s32[5], index: 0, kind: input, shape index: {}]
  %s1 = inlined_call_operand.hbm [shape: s32[5], index: 1, kind: input, shape index: {}]
  %s2 = inlined_call_operand.hbm [shape: s32[5], index: 2, kind: input, shape index: {}]
  %s3 = inlined_call_operand.hbm [shape: s32[5], index: 3, kind: input, shape index: {}]
  %s4 = inlined_call_operand.hbm [shape: s32[5], index: 4, kind: input, shape index: {}]
  %s5 = inlined_call_operand.hbm [shape: s32[5], index: 5, kind: input, shape index: {}]
  %s6 = inlined_call_operand.hbm [shape: bf16[256,256], index: 6, kind: input, shape index: {}]
  %s7 = inlined_call_operand.hbm [shape: bf16[4,256,256], index: 7, kind: input, shape index: {}]
  %s8 = inlined_call_operand.hbm [shape: f32[256,256], index: 8, kind: output, shape index: {}]
  %s9 = sld [smem:[#allocation0]]
  $region69: #{tpu_custom_call.1} parent=0
    _
  %s11 = ssub.s32 1, %s9
  %s12 = scalar_select 0, %s11, %s9
  %14 = dma.hbm_to_smem %s0, 16, [#allocation4], [#allocation3]
  %16 = dma.hbm_to_smem %s1, 16, [#allocation5], [#allocation3]
  %18 = dma.hbm_to_smem %s2, 16, [#allocation6], [#allocation3]
  %20 = dma.hbm_to_smem %s3, 16, [#allocation7], [#allocation3]
  %22 = dma.hbm_to_smem %s4, 16, [#allocation8], [#allocation3]
  %24 = dma.hbm_to_smem %s5, 16, [#allocation9], [#allocation3]
  %25 = dma.done [#allocation3], 96
  %26 = sfence
  $region1: #{tpu_custom_call.1} parent=0
    #allocation10 [shape = 'u8[65536]{0}', space=vmem, size = 0x10000, scoped, tag = 'input window, operand 6']
    #allocation11 [shape = 's32[2]{0}', space=sflag, size = 0x8, scoped, tag = 'scoped memory for tpu_custom_call.1']
    #allocation12 [shape = 's32[2]{0}', space=sflag, size = 0x8, scoped, tag = 'scoped memory for tpu_custom_call.1']
    #allocation13 [shape = 'u8[65536]{0}', space=vmem, size = 0x10000, scoped, tag = 'input window, operand 7']
    #allocation14 [shape = 's32[2]{0}', space=sflag, size = 0x8, scoped, tag = 'scoped memory for tpu_custom_call.1']
    #allocation15 [shape = 'u8[131072]{0}', space=vmem, size = 0x20000, scoped, tag = 'output window, operand 0']
    %27 = vsyncpa [#allocation11], 0
    %s28 = scalar_lea.sflag [#allocation11], 1
    %29 = vsyncpa %s28, 0
    %30 = vsyncpa [#allocation14], 0
    %s31 = scalar_lea.sflag [#allocation14], 1
    %32 = vsyncpa %s31, 0
    %33 = vsyncpa [#allocation12], 0
    %s34 = scalar_lea.sflag [#allocation12], 1
    %35 = vsyncpa %s34, 0
    loop: start=0, step=1, limit=22
    $region2: #{tpu_custom_call.1} parent=1 // loop_pre_header
      _
    $region3: #{tpu_custom_call.1} parent=1 // loop_header
      %s37 = sphi 0, %s41
      %p38 = scmp.ge.s32.totalorder %s37, 22
      %s44 = sphi 0, %s63
      %s45 = sphi 0, %s59
      %s46 = sphi 0, %s55
      %s47 = sphi 0, %s44
      %s48 = sphi 0, %s45
      %s49 = sphi 0, %s46
      %s50 = sphi 0, %s47
      %s51 = sphi 0, %s48
      %s52 = sphi 0, %s49
      %s70 = sphi 0, %s72
      %s73 = sphi 0, %s70
      %s74 = sphi 0, %s73
      %s90 = sphi 0, %s74
      %s102 = sphi 0, %s104
      %s105 = sphi 0, %s102
      %s106 = sphi 0, %s105
      %s122 = sphi 0, %s106
      %s132 = sphi 0, %s134
      %s135 = sphi 0, %s132
      %s136 = sphi 0, %s135
      %s152 = sphi 0, %s136
    $region4: #{tpu_custom_call.1} parent=1 // loop_header_branch
      %40 = sbr.rel (%p38) target = $region8
    $region5: #{tpu_custom_call.1} parent=1 // loop_body
      %s42 = ssub.s32 %s37, 1
      %s43 = ssub.s32 %s37, 2
      %s53 = sadd.s32 1, %s46
      %p54 = scmp.ge.s32.totalorder %s53, 2
      %s55 = scalar_select %p54, 0, %s53
      %s56 = sadd.s32 1, %s45
      %s57 = scalar_select %p54, %s56, %s45
      %p58 = scmp.ge.s32.totalorder %s57, 5
      %s59 = scalar_select %p58, 0, %s57
      %s60 = sadd.s32 1, %s44
      %s61 = scalar_select %p58, %s60, %s44
      %p62 = scmp.ge.s32.totalorder %s61, 2
      %s63 = scalar_select %p62, 0, %s61
      %s64 = sld [smem:[#allocation5 + %s45]]
      %s65 = sld [smem:[#allocation5 + %s59]]
      %s66 = ssub.s32 %s64, %s65
      %s67 = ssub.s32 %s46, %s55
      %s68 = sor.u32 %s66, %s67
      %p69 = scmp.eq.s32.totalorder %s68, 0
      %s71 = sadd.s32 %s70, 1
      %s72 = scalar_select %p69, %s70, %s71
      %p75 = pneg %p69
      %p76 = scmp.eq.s32.totalorder %s37, 19
      %p77 = por %p75, %p76
      %p78 = scmp.ne.s32.totalorder %s70, %s73
      %p79 = scmp.eq.s32.totalorder %s37, 0
      %p80 = por %p78, %p79
      %p81 = scmp.ne.s32.totalorder %s70, %s73
      %p82 = scmp.eq.s32.totalorder %s42, 19
      %p83 = por %p81, %p82
      %p84 = scmp.ne.s32.totalorder %s73, %s74
      %p85 = scmp.eq.s32.totalorder %s42, 0
      %p86 = por %p84, %p85
      %p87 = scmp.ne.s32.totalorder %s73, %s74
      %p88 = scmp.eq.s32.totalorder %s43, 19
      %p89 = por %p87, %p88
      %p91 = scmp.ne.s32.totalorder %s74, %s90
      %p92 = scmp.eq.s32.totalorder %s43, 0
      %p93 = por %p91, %p92
      %s94 = sld [smem:[#allocation4 + %s45]]
      %s95 = sld [smem:[#allocation4 + %s59]]
      %s96 = ssub.s32 %s94, %s95
      %s97 = ssub.s32 %s46, %s55
      %s98 = sor.u32 %s96, %s97
      %s99 = ssub.s32 %s44, %s63
      %s100 = sor.u32 %s98, %s99
      %p101 = scmp.eq.s32.totalorder %s100, 0
      %s103 = sadd.s32 %s102, 1
      %s104 = scalar_select %p101, %s102, %s103
      %p107 = pneg %p101
      %p108 = scmp.eq.s32.totalorder %s37, 19
      %p109 = por %p107, %p108
      %p110 = scmp.ne.s32.totalorder %s102, %s105
      %p111 = scmp.eq.s32.totalorder %s37, 0
      %p112 = por %p110, %p111
      %p113 = scmp.ne.s32.totalorder %s102, %s105
      %p114 = scmp.eq.s32.totalorder %s42, 19
      %p115 = por %p113, %p114
      %p116 = scmp.ne.s32.totalorder %s105, %s106
      %p117 = scmp.eq.s32.totalorder %s42, 0
      %p118 = por %p116, %p117
      %p119 = scmp.ne.s32.totalorder %s105, %s106
      %p120 = scmp.eq.s32.totalorder %s43, 19
      %p121 = por %p119, %p120
      %p123 = scmp.ne.s32.totalorder %s106, %s122
      %p124 = scmp.eq.s32.totalorder %s43, 0
      %p125 = por %p123, %p124
      %s126 = sld [smem:[#allocation5 + %s45]]
      %s127 = sld [smem:[#allocation5 + %s59]]
      %s128 = ssub.s32 %s126, %s127
      %s129 = ssub.s32 %s44, %s63
      %s130 = sor.u32 %s128, %s129
      %p131 = scmp.eq.s32.totalorder %s130, 0
      %s133 = sadd.s32 %s132, 1
      %s134 = scalar_select %p131, %s132, %s133
      %p137 = pneg %p131
      %p138 = scmp.eq.s32.totalorder %s37, 19
      %p139 = por %p137, %p138
      %p140 = scmp.ne.s32.totalorder %s132, %s135
      %p141 = scmp.eq.s32.totalorder %s37, 0
      %p142 = por %p140, %p141
      %p143 = scmp.ne.s32.totalorder %s132, %s135
      %p144 = scmp.eq.s32.totalorder %s42, 19
      %p145 = por %p143, %p144
      %p146 = scmp.ne.s32.totalorder %s135, %s136
      %p147 = scmp.eq.s32.totalorder %s42, 0
      %p148 = por %p146, %p147
      %p149 = scmp.ne.s32.totalorder %s135, %s136
      %p150 = scmp.eq.s32.totalorder %s43, 19
      %p151 = por %p149, %p150
      %p153 = scmp.ne.s32.totalorder %s136, %s152
      %p154 = scmp.eq.s32.totalorder %s43, 0
      %p155 = por %p153, %p154
      %p156 = scmp.le.s32.totalorder 1, %s37
      %p157 = scmp.lt.s32.totalorder %s37, 21
      %p158 = pnand %p156, %p157
      %p159 = pneg %p158
      // Predicated region
      $region9: #{tpu_custom_call.1} parent=5 // pred_check
        _
      $region10: #{tpu_custom_call.1} parent=5 // pred_check_branch
        %161 = sbr.rel (%p158) target = $region12
      $region11: #{tpu_custom_call.1} parent=5 // pred_region
        %s162 = ssub.s32 %s37, 1
      $region12: #{tpu_custom_call.1} parent=5 // pred_fallthru
        _
      %p163 = scmp.lt.s32.totalorder %s37, 20
      // Predicated region
      $region13: #{tpu_custom_call.1} parent=5 // pred_check
        %p164 = pneg %p163
      $region14: #{tpu_custom_call.1} parent=5 // pred_check_branch
        %166 = sbr.rel (%p164) target = $region16
      $region15: #{tpu_custom_call.1} parent=5 // pred_region
        // Predicated region
        $region17: #{tpu_custom_call.1} parent=15 // pred_check
          %p167 = pneg %p80
        $region18: #{tpu_custom_call.1} parent=15 // pred_check_branch
          %169 = sbr.rel (%p167) target = $region20
        $region19: #{tpu_custom_call.1} parent=15 // pred_region
          %s170 = sand.u32 %s70, 1
          %s171 = scalar_lea.sflag [#allocation11], %s170
          %s172 = sand.u32 %s70, 1
          %s173 = smul.addr %s172, 64
          %s174 = scalar_lea.vmem [#allocation10], %s173
          %s175 = sld [smem:[#allocation5 + %s45]]
          %s176 = smul.u32 16, %s175
          %s178 = ssub.s32 1024, 1024
          %179 = vsyncadd %s171, %s178
          %s180 = smul.addr %s176, 2
          %s181 = sadd.s32 %s46, %s180
          %s182 = smul.addr %s181, 64
          %s183 = scalar_lea.hbm %s6, %s182
          %s184 = sshll.u32 %s174, 4
          %s185 = int_to_ptr.vmem [resolvable:$true] %s184
          %190 = dma.hbm_to_vmem [thread:$0]  %s183, 1024, %s185, %s171, 128, 64, 4
        $region20: #{tpu_custom_call.1} parent=15 // pred_fallthru
          _
        // Predicated region
        $region21: #{tpu_custom_call.1} parent=15 // pred_check
          %p191 = pneg %p112
        $region22: #{tpu_custom_call.1} parent=15 // pred_check_branch
          %193 = sbr.rel (%p191) target = $region24
        $region23: #{tpu_custom_call.1} parent=15 // pred_region
          %s194 = sand.u32 %s102, 1
          %s195 = scalar_lea.sflag [#allocation14], %s194
          %s196 = sand.u32 %s102, 1
          %s197 = smul.addr %s196, 64
          %s198 = scalar_lea.vmem [#allocation13], %s197
          %s199 = sld [smem:[#allocation4 + %s45]]
          %s200 = smul.u32 16, %s46
          %s202 = ssub.s32 1024, 1024
          %203 = vsyncadd %s195, %s202
          %s204 = smul.addr %s200, 2
          %s205 = sadd.s32 %s44, %s204
          %s206 = smul.addr %s199, 64
          %s207 = sadd.s32 %s205, %s206
          %s208 = smul.addr %s207, 64
          %s209 = scalar_lea.hbm %s7, %s208
          %s210 = sshll.u32 %s198, 4
          %s211 = int_to_ptr.vmem [resolvable:$true] %s210
          %216 = dma.hbm_to_vmem [thread:$0]  %s209, 1024, %s211, %s195, 128, 64, 4
        $region24: #{tpu_custom_call.1} parent=15 // pred_fallthru
          _
      $region16: #{tpu_custom_call.1} parent=5 // pred_fallthru
        _
      %p217 = scmp.le.s32.totalorder 1, %s37
      %p218 = scmp.lt.s32.totalorder %s37, 21
      %p219 = pnand %p217, %p218
      %p220 = pneg %p219
      // Predicated region
      $region25: #{tpu_custom_call.1} parent=5 // pred_check
        _
      $region26: #{tpu_custom_call.1} parent=5 // pred_check_branch
        %222 = sbr.rel (%p219) target = $region28
      $region27: #{tpu_custom_call.1} parent=5 // pred_region
        %s223 = ssub.s32 %s37, 1
        %s224 = sand.u32 %s73, 1
        %s225 = scalar_lea.sflag [#allocation11], %s224
        %s226 = sand.u32 %s73, 1
        %s227 = smul.addr %s226, 64
        %s228 = scalar_lea.vmem [#allocation10], %s227
        // Predicated region
        $region29: #{tpu_custom_call.1} parent=27 // pred_check
          %p229 = pneg %p86
        $region30: #{tpu_custom_call.1} parent=27 // pred_check_branch
          %231 = sbr.rel (%p229) target = $region32
        $region31: #{tpu_custom_call.1} parent=27 // pred_region
          %232 = dma.done %s225, 1024
        $region32: #{tpu_custom_call.1} parent=27 // pred_fallthru
          _
        %s233 = sand.u32 %s105, 1
        %s234 = scalar_lea.sflag [#allocation14], %s233
        %s235 = sand.u32 %s105, 1
        %s236 = smul.addr %s235, 64
        %s237 = scalar_lea.vmem [#allocation13], %s236
        // Predicated region
        $region33: #{tpu_custom_call.1} parent=27 // pred_check
          %p238 = pneg %p118
        $region34: #{tpu_custom_call.1} parent=27 // pred_check_branch
          %240 = sbr.rel (%p238) target = $region36
        $region35: #{tpu_custom_call.1} parent=27 // pred_region
          %241 = dma.done %s234, 1024
        $region36: #{tpu_custom_call.1} parent=27 // pred_fallthru
          _
        %s242 = sand.u32 %s73, 1
        %s243 = scalar_lea.sflag [#allocation11], %s242
        %s244 = sand.u32 %s73, 1
        %s245 = smul.addr %s244, 64
        %s246 = scalar_lea.vmem [#allocation10], %s245
        %p247 = pneg %p86
        %p248 = pneg %p83
        %s249 = sand.u32 %s105, 1
        %s250 = scalar_lea.sflag [#allocation14], %s249
        %s251 = sand.u32 %s105, 1
        %s252 = smul.addr %s251, 64
        %s253 = scalar_lea.vmem [#allocation13], %s252
        %p254 = pneg %p118
        %p255 = pneg %p115
        %p256 = pneg %p148
        %p257 = pneg %p145
        %s258 = sand.u32 %s135, 1
        %s259 = scalar_lea.sflag [#allocation12], %s258
        %s260 = sand.u32 %s135, 1
        %s261 = smul.addr %s260, 128
        %s262 = scalar_lea.vmem [#allocation15], %s261
        %s263 = sld [smem:[#allocation5 + %s48]]
        %s264 = smul.u32 16, %s263
        %s265 = sld [smem:[#allocation4 + %s48]]
        %s266 = smul.u32 16, %s49
        %s267 = sld [smem:[#allocation5 + %s48]]
        %s268 = smul.u32 16, %s267
        %s270 = sld [smem:[#allocation8 + %s48]]
        %s271 = sld [smem:[#allocation9 + %s48]]
        %p272 = scmp.gt.s32.totalorder %s271, %s270
        %p273 = scmp.eq.s32.totalorder %s270, 0
        %p274 = scmp.eq.s32.totalorder %s271, 128
        %p275 = pnand %p273, %p274
        %p276 = pneg %p275
        %s277 = sld [smem:[#allocation6 + %s48]]
        %p278 = scmp.eq.s32.totalorder %s277, 1
        %p279 = scmp.eq.s32.totalorder %s49, 0
        %p280 = pnand %p278, %p279
        %p281 = pneg %p280
        // Predicated region
        $region37: #{tpu_custom_call.1} parent=27 // pred_check
          _
        $region38: #{tpu_custom_call.1} parent=27 // pred_check_branch
          %283 = sbr.rel (%p280) target = $region40
        $region39: #{tpu_custom_call.1} parent=27 // pred_region
          %284 = vst [vmem:[#allocation2] sm:$0xff] 0.0
          %285 = vst [vmem:[#allocation2 + $0x8] sm:$0xff] 0.0
          %286 = vst [vmem:[#allocation2 + $0x10] sm:$0xff] 0.0
          %287 = vst [vmem:[#allocation2 + $0x18] sm:$0xff] 0.0
          %288 = vst [vmem:[#allocation2 + $0x20] sm:$0xff] 0.0
          %289 = vst [vmem:[#allocation2 + $0x28] sm:$0xff] 0.0
          %290 = vst [vmem:[#allocation2 + $0x30] sm:$0xff] 0.0
          %291 = vst [vmem:[#allocation2 + $0x38] sm:$0xff] 0.0
          %292 = vst [vmem:[#allocation2 + $0x40] sm:$0xff] 0.0
          %293 = vst [vmem:[#allocation2 + $0x48] sm:$0xff] 0.0
          %294 = vst [vmem:[#allocation2 + $0x50] sm:$0xff] 0.0
          %295 = vst [vmem:[#allocation2 + $0x58] sm:$0xff] 0.0
          %296 = vst [vmem:[#allocation2 + $0x60] sm:$0xff] 0.0
          %297 = vst [vmem:[#allocation2 + $0x68] sm:$0xff] 0.0
          %298 = vst [vmem:[#allocation2 + $0x70] sm:$0xff] 0.0
          %299 = vst [vmem:[#allocation2 + $0x78] sm:$0xff] 0.0
        $region40: #{tpu_custom_call.1} parent=27 // pred_fallthru
          _
        // Predicated region
        $region41: #{tpu_custom_call.1} parent=27 // pred_check
          %p300 = pneg %p272
        $region42: #{tpu_custom_call.1} parent=27 // pred_check_branch
          %302 = sbr.rel (%p300) target = $region44
        $region43: #{tpu_custom_call.1} parent=27 // pred_region
          %v303 = vld [vmem:[%s228] sm:$0xf]
          %v304 = vld [vmem:[%s228 + $0x4] sm:$0xf]
          %v305 = vld [vmem:[%s228 + $0x8] sm:$0xf]
          %v306 = vld [vmem:[%s228 + $0xc] sm:$0xf]
          %v307 = vld [vmem:[%s228 + $0x10] sm:$0xf]
          %v308 = vld [vmem:[%s228 + $0x14] sm:$0xf]
          %v309 = vld [vmem:[%s228 + $0x18] sm:$0xf]
          %v310 = vld [vmem:[%s228 + $0x1c] sm:$0xf]
          %v311 = vld [vmem:[%s228 + $0x20] sm:$0xf]
          %v312 = vld [vmem:[%s228 + $0x24] sm:$0xf]
          %v313 = vld [vmem:[%s228 + $0x28] sm:$0xf]
          %v314 = vld [vmem:[%s228 + $0x2c] sm:$0xf]
          %v315 = vld [vmem:[%s228 + $0x30] sm:$0xf]
          %v316 = vld [vmem:[%s228 + $0x34] sm:$0xf]
          %v317 = vld [vmem:[%s228 + $0x38] sm:$0xf]
          %v318 = vld [vmem:[%s228 + $0x3c] sm:$0xf]
          %v319 = vld [vmem:[%s237] sm:$0xf]
          %v320 = vld [vmem:[%s237 + $0x4] sm:$0xf]
          %v321 = vld [vmem:[%s237 + $0x8] sm:$0xf]
          %v322 = vld [vmem:[%s237 + $0xc] sm:$0xf]
          %v323 = vld [vmem:[%s237 + $0x10] sm:$0xf]
          %v324 = vld [vmem:[%s237 + $0x14] sm:$0xf]
          %v325 = vld [vmem:[%s237 + $0x18] sm:$0xf]
          %v326 = vld [vmem:[%s237 + $0x1c] sm:$0xf]
          %v327 = vld [vmem:[%s237 + $0x20] sm:$0xf]
          %v328 = vld [vmem:[%s237 + $0x24] sm:$0xf]
          %v329 = vld [vmem:[%s237 + $0x28] sm:$0xf]
          %v330 = vld [vmem:[%s237 + $0x2c] sm:$0xf]
          %v331 = vld [vmem:[%s237 + $0x30] sm:$0xf]
          %v332 = vld [vmem:[%s237 + $0x34] sm:$0xf]
          %v333 = vld [vmem:[%s237 + $0x38] sm:$0xf]
          %v334 = vld [vmem:[%s237 + $0x3c] sm:$0xf]
          %v351 = vunpack.c.l.b16 %v303
          %v352 = vunpack.c.l.b16 %v304
          %v353 = vunpack.c.l.b16 %v305
          %v354 = vunpack.c.l.b16 %v306
          %v355 = vunpack.c.l.b16 %v307
          %v356 = vunpack.c.l.b16 %v308
          %v357 = vunpack.c.l.b16 %v309
          %v358 = vunpack.c.l.b16 %v310
          %v359 = vunpack.c.l.b16 %v311
          %v360 = vunpack.c.l.b16 %v312
          %v361 = vunpack.c.l.b16 %v313
          %v362 = vunpack.c.l.b16 %v314
          %v363 = vunpack.c.l.b16 %v315
          %v364 = vunpack.c.l.b16 %v316
          %v365 = vunpack.c.l.b16 %v317
          %v366 = vunpack.c.l.b16 %v318
          %v367 = vpack.c.b16 %v352, %v351
          %v368 = vpack.c.b16 %v354, %v353
          %v369 = vpack.c.b16 %v356, %v355
          %v370 = vpack.c.b16 %v358, %v357
          %v371 = vpack.c.b16 %v360, %v359
          %v372 = vpack.c.b16 %v362, %v361
          %v373 = vpack.c.b16 %v364, %v363
          %v374 = vpack.c.b16 %v366, %v365
          %v399 = vunpack.c.l.b16 %v319
          %v400 = vunpack.c.l.b16 %v320
          %v401 = vunpack.c.l.b16 %v321
          %v402 = vunpack.c.l.b16 %v322
          %v403 = vunpack.c.l.b16 %v323
          %v404 = vunpack.c.l.b16 %v324
          %v405 = vunpack.c.l.b16 %v325
          %v406 = vunpack.c.l.b16 %v326
          %v407 = vunpack.c.l.b16 %v327
          %v408 = vunpack.c.l.b16 %v328
          %v409 = vunpack.c.l.b16 %v329
          %v410 = vunpack.c.l.b16 %v330
          %v411 = vunpack.c.l.b16 %v331
          %v412 = vunpack.c.l.b16 %v332
          %v413 = vunpack.c.l.b16 %v333
          %v414 = vunpack.c.l.b16 %v334
          %v415 = vpack.c.b16 %v400, %v399
          %v416 = vpack.c.b16 %v402, %v401
          %v417 = vpack.c.b16 %v404, %v403
          %v418 = vpack.c.b16 %v406, %v405
          %v419 = vpack.c.b16 %v408, %v407
          %v420 = vpack.c.b16 %v410, %v409
          %v421 = vpack.c.b16 %v412, %v411
          %v422 = vpack.c.b16 %v414, %v413
          %431 = vmatprep.subr.bf16.mxu0 0
          %432 = vmatpush1.bf16.msra.mxu0 %v415
          %433 = vmatprep.subr.bf16.mxu0 0
          %434 = vmatpush1.bf16.msra.mxu0 %v416
          %435 = vmatprep.subr.bf16.mxu0 0
          %436 = vmatpush1.bf16.msra.mxu0 %v417
          %437 = vmatprep.subr.bf16.mxu0 0
          %438 = vmatpush1.bf16.msra.mxu0 %v418
          %439 = vmatprep.subr.bf16.mxu0 0
          %440 = vmatpush1.bf16.msra.mxu0 %v419
          %441 = vmatprep.subr.bf16.mxu0 0
          %442 = vmatpush1.bf16.msra.mxu0 %v420
          %443 = vmatprep.subr.bf16.mxu0 0
          %444 = vmatpush1.bf16.msra.mxu0 %v421
          %445 = vmatprep.subr.bf16.mxu0 0
          %446 = vmatpush1.bf16.msra.mxu0 %v422
          %447 = vmatprep.subr.bf16.mxu0 0
          %448 = vmatpush1.bf16.msra.mxu0 0
          %449 = vmatprep.subr.bf16.mxu0 0
          %450 = vmatpush1.bf16.msra.mxu0 0
          %451 = vmatprep.subr.bf16.mxu0 0
          %452 = vmatpush1.bf16.msra.mxu0 0
          %453 = vmatprep.subr.bf16.mxu0 0
          %454 = vmatpush1.bf16.msra.mxu0 0
          %455 = vmatprep.subr.bf16.mxu0 0
          %456 = vmatpush1.bf16.msra.mxu0 0
          %457 = vmatprep.subr.bf16.mxu0 0
          %458 = vmatpush1.bf16.msra.mxu0 0
          %459 = vmatprep.subr.bf16.mxu0 0
          %460 = vmatpush1.bf16.msra.mxu0 0
          %461 = vmatprep.subr.bf16.mxu0 0
          %462 = vmatpush1.bf16.msra.mxu0 0
          %463 = vmatprep.mubr.bf16.mxu0 0
          %464 = vmatmul.mubr.bf16.gmra.mrb[0].mxu0 %v367
          %v465 = vpop.f32.mrb[0].mxu0
          %v466 = vadd.f32 0.0, %v465
          %v467 = vpop.f32.mrb[0].mxu0
          %v468 = vpop.f32.mrb[0].mxu0
          %v469 = vadd.f32 0.0, %v468
          %v470 = vpop.f32.mrb[0].mxu0
          %471 = vmatprep.mubr.bf16.mxu0 0
          %472 = vmatmul.mubr.bf16.gmra.mrb[0].mxu0 %v368
          %v473 = vpop.f32.mrb[0].mxu0
          %v474 = vadd.f32 0.0, %v473
          %v475 = vpop.f32.mrb[0].mxu0
          %v476 = vpop.f32.mrb[0].mxu0
          %v477 = vadd.f32 0.0, %v476
          %v478 = vpop.f32.mrb[0].mxu0
          %479 = vmatprep.mubr.bf16.mxu0 0
          %480 = vmatmul.mubr.bf16.gmra.mrb[0].mxu0 %v369
          %v481 = vpop.f32.mrb[0].mxu0
          %v482 = vadd.f32 0.0, %v481
          %v483 = vpop.f32.mrb[0].mxu0
          %v484 = vpop.f32.mrb[0].mxu0
          %v485 = vadd.f32 0.0, %v484
          %v486 = vpop.f32.mrb[0].mxu0
          %487 = vmatprep.mubr.bf16.mxu0 0
          %488 = vmatmul.mubr.bf16.gmra.mrb[0].mxu0 %v370
          %v489 = vpop.f32.mrb[0].mxu0
          %v490 = vadd.f32 0.0, %v489
          %v491 = vpop.f32.mrb[0].mxu0
          %v492 = vpop.f32.mrb[0].mxu0
          %v493 = vadd.f32 0.0, %v492
          %v494 = vpop.f32.mrb[0].mxu0
          %495 = vmatprep.mubr.bf16.mxu0 0
          %496 = vmatmul.mubr.bf16.gmra.mrb[0].mxu0 %v371
          %v497 = vpop.f32.mrb[0].mxu0
          %v498 = vadd.f32 0.0, %v497
          %v499 = vpop.f32.mrb[0].mxu0
          %v500 = vpop.f32.mrb[0].mxu0
          %v501 = vadd.f32 0.0, %v500
          %v502 = vpop.f32.mrb[0].mxu0
          %503 = vmatprep.mubr.bf16.mxu0 0
          %504 = vmatmul.mubr.bf16.gmra.mrb[0].mxu0 %v372
          %v505 = vpop.f32.mrb[0].mxu0
          %v506 = vadd.f32 0.0, %v505
          %v507 = vpop.f32.mrb[0].mxu0
          %v508 = vpop.f32.mrb[0].mxu0
          %v509 = vadd.f32 0.0, %v508
          %v510 = vpop.f32.mrb[0].mxu0
          %511 = vmatprep.mubr.bf16.mxu0 0
          %512 = vmatmul.mubr.bf16.gmra.mrb[0].mxu0 %v373
          %v513 = vpop.f32.mrb[0].mxu0
          %v514 = vadd.f32 0.0, %v513
          %v515 = vpop.f32.mrb[0].mxu0
          %v516 = vpop.f32.mrb[0].mxu0
          %v517 = vadd.f32 0.0, %v516
          %v518 = vpop.f32.mrb[0].mxu0
          %519 = vmatprep.mubr.bf16.mxu0 0
          %520 = vmatmul.mubr.bf16.gmra.mrb[0].mxu0 %v374
          %v521 = vpop.f32.mrb[0].mxu0
          %v522 = vadd.f32 0.0, %v521
          %v523 = vpop.f32.mrb[0].mxu0
          %v524 = vpop.f32.mrb[0].mxu0
          %v525 = vadd.f32 0.0, %v524
          %v526 = vpop.f32.mrb[0].mxu0
          %527 = vdwg.mxu0
          // Predicated region
          $region45: #{tpu_custom_call.1} parent=43 // pred_check
            _
          $region46: #{tpu_custom_call.1} parent=43 // pred_check_branch
            %529 = sbr.rel (%p275) target = $region48
          $region47: #{tpu_custom_call.1} parent=43 // pred_region
            %v530 = vld [vmem:[#allocation2] sm:$0xff]
            %v531 = vld [vmem:[#allocation2 + $0x8] sm:$0xff]
            %v532 = vld [vmem:[#allocation2 + $0x10] sm:$0xff]
            %v533 = vld [vmem:[#allocation2 + $0x18] sm:$0xff]
            %v534 = vld [vmem:[#allocation2 + $0x20] sm:$0xff]
            %v535 = vld [vmem:[#allocation2 + $0x28] sm:$0xff]
            %v536 = vld [vmem:[#allocation2 + $0x30] sm:$0xff]
            %v537 = vld [vmem:[#allocation2 + $0x38] sm:$0xff]
            %v538 = vld [vmem:[#allocation2 + $0x40] sm:$0xff]
            %v539 = vld [vmem:[#allocation2 + $0x48] sm:$0xff]
            %v540 = vld [vmem:[#allocation2 + $0x50] sm:$0xff]
            %v541 = vld [vmem:[#allocation2 + $0x58] sm:$0xff]
            %v542 = vld [vmem:[#allocation2 + $0x60] sm:$0xff]
            %v543 = vld [vmem:[#allocation2 + $0x68] sm:$0xff]
            %v544 = vld [vmem:[#allocation2 + $0x70] sm:$0xff]
            %v545 = vld [vmem:[#allocation2 + $0x78] sm:$0xff]
            %v546 = vadd.f32 %v530, %v466
            %v547 = vadd.f32 %v531, %v469
            %v548 = vadd.f32 %v532, %v474
            %v549 = vadd.f32 %v533, %v477
            %v550 = vadd.f32 %v534, %v482
            %v551 = vadd.f32 %v535, %v485
            %v552 = vadd.f32 %v536, %v490
            %v553 = vadd.f32 %v537, %v493
            %v554 = vadd.f32 %v538, %v498
            %v555 = vadd.f32 %v539, %v501
            %v556 = vadd.f32 %v540, %v506
            %v557 = vadd.f32 %v541, %v509
            %v558 = vadd.f32 %v542, %v514
            %v559 = vadd.f32 %v543, %v517
            %v560 = vadd.f32 %v544, %v522
            %v561 = vadd.f32 %v545, %v525
            %562 = vst [vmem:[#allocation2] sm:$0xff] %v546
            %563 = vst [vmem:[#allocation2 + $0x8] sm:$0xff] %v547
            %564 = vst [vmem:[#allocation2 + $0x10] sm:$0xff] %v548
            %565 = vst [vmem:[#allocation2 + $0x18] sm:$0xff] %v549
            %566 = vst [vmem:[#allocation2 + $0x20] sm:$0xff] %v550
            %567 = vst [vmem:[#allocation2 + $0x28] sm:$0xff] %v551
            %568 = vst [vmem:[#allocation2 + $0x30] sm:$0xff] %v552
            %569 = vst [vmem:[#allocation2 + $0x38] sm:$0xff] %v553
            %570 = vst [vmem:[#allocation2 + $0x40] sm:$0xff] %v554
            %571 = vst [vmem:[#allocation2 + $0x48] sm:$0xff] %v555
            %572 = vst [vmem:[#allocation2 + $0x50] sm:$0xff] %v556
            %573 = vst [vmem:[#allocation2 + $0x58] sm:$0xff] %v557
            %574 = vst [vmem:[#allocation2 + $0x60] sm:$0xff] %v558
            %575 = vst [vmem:[#allocation2 + $0x68] sm:$0xff] %v559
            %576 = vst [vmem:[#allocation2 + $0x70] sm:$0xff] %v560
            %577 = vst [vmem:[#allocation2 + $0x78] sm:$0xff] %v561
          $region48: #{tpu_custom_call.1} parent=43 // pred_fallthru
            _
          %p578 = pneg %p276
          // Predicated region
          $region49: #{tpu_custom_call.1} parent=43 // pred_check
            _
          $region50: #{tpu_custom_call.1} parent=43 // pred_check_branch
            %580 = sbr.rel (%p276) target = $region52
          $region51: #{tpu_custom_call.1} parent=43 // pred_region
            %v581 = vlaneseq
            %v582 = vshrl.u32 %v581, 7
            %v583 = vadd.s32 %v582, 8
            %v584 = vadd.s32 %v582, 16
            %v585 = vadd.s32 %v582, 24
            %v586 = vadd.s32 %v582, 32
            %v587 = vadd.s32 %v582, 40
            %v588 = vadd.s32 %v582, 48
            %v589 = vadd.s32 %v582, 56
            %v590 = vadd.s32 %v582, 64
            %v591 = vadd.s32 %v582, 72
            %v592 = vadd.s32 %v582, 80
            %v593 = vadd.s32 %v582, 88
            %v594 = vadd.s32 %v582, 96
            %v595 = vadd.s32 %v582, 104
            %v596 = vadd.s32 %v582, 112
            %v597 = vadd.s32 %v582, 120
            %v598 = vstv %s270
            %vm599 = vcmp.ge.s32.totalorder %v582, %v598
            %vm600 = vcmp.ge.s32.totalorder %v583, %v598
            %vm601 = vcmp.ge.s32.totalorder %v584, %v598
            %vm602 = vcmp.ge.s32.totalorder %v585, %v598
            %vm603 = vcmp.ge.s32.totalorder %v586, %v598
            %vm604 = vcmp.ge.s32.totalorder %v587, %v598
            %vm605 = vcmp.ge.s32.totalorder %v588, %v598
            %vm606 = vcmp.ge.s32.totalorder %v589, %v598
            %vm607 = vcmp.ge.s32.totalorder %v590, %v598
            %vm608 = vcmp.ge.s32.totalorder %v591, %v598
            %vm609 = vcmp.ge.s32.totalorder %v592, %v598
            %vm610 = vcmp.ge.s32.totalorder %v593, %v598
            %vm611 = vcmp.ge.s32.totalorder %v594, %v598
            %vm612 = vcmp.ge.s32.totalorder %v595, %v598
            %vm613 = vcmp.ge.s32.totalorder %v596, %v598
            %vm614 = vcmp.ge.s32.totalorder %v597, %v598
            %v615 = vstv %s271
            %vm616 = vcmp.lt.s32.totalorder %v582, %v615
            %vm617 = vcmp.lt.s32.totalorder %v583, %v615
            %vm618 = vcmp.lt.s32.totalorder %v584, %v615
            %vm619 = vcmp.lt.s32.totalorder %v585, %v615
            %vm620 = vcmp.lt.s32.totalorder %v586, %v615
            %vm621 = vcmp.lt.s32.totalorder %v587, %v615
            %vm622 = vcmp.lt.s32.totalorder %v588, %v615
            %vm623 = vcmp.lt.s32.totalorder %v589, %v615
            %vm624 = vcmp.lt.s32.totalorder %v590, %v615
            %vm625 = vcmp.lt.s32.totalorder %v591, %v615
            %vm626 = vcmp.lt.s32.totalorder %v592, %v615
            %vm627 = vcmp.lt.s32.totalorder %v593, %v615
            %vm628 = vcmp.lt.s32.totalorder %v594, %v615
            %vm629 = vcmp.lt.s32.totalorder %v595, %v615
            %vm630 = vcmp.lt.s32.totalorder %v596, %v615
            %vm631 = vcmp.lt.s32.totalorder %v597, %v615
            %vm632 = vmand %vm599, %vm616
            %vm633 = vmand %vm600, %vm617
            %vm634 = vmand %vm601, %vm618
            %vm635 = vmand %vm602, %vm619
            %vm636 = vmand %vm603, %vm620
            %vm637 = vmand %vm604, %vm621
            %vm638 = vmand %vm605, %vm622
            %vm639 = vmand %vm606, %vm623
            %vm640 = vmand %vm607, %vm624
            %vm641 = vmand %vm608, %vm625
            %vm642 = vmand %vm609, %vm626
            %vm643 = vmand %vm610, %vm627
            %vm644 = vmand %vm611, %vm628
            %vm645 = vmand %vm612, %vm629
            %vm646 = vmand %vm613, %vm630
            %vm647 = vmand %vm614, %vm631
            %v648 = vld [vmem:[#allocation2] sm:$0xff]
            %v649 = vld [vmem:[#allocation2 + $0x8] sm:$0xff]
            %v650 = vld [vmem:[#allocation2 + $0x10] sm:$0xff]
            %v651 = vld [vmem:[#allocation2 + $0x18] sm:$0xff]
            %v652 = vld [vmem:[#allocation2 + $0x20] sm:$0xff]
            %v653 = vld [vmem:[#allocation2 + $0x28] sm:$0xff]
            %v654 = vld [vmem:[#allocation2 + $0x30] sm:$0xff]
            %v655 = vld [vmem:[#allocation2 + $0x38] sm:$0xff]
            %v656 = vld [vmem:[#allocation2 + $0x40] sm:$0xff]
            %v657 = vld [vmem:[#allocation2 + $0x48] sm:$0xff]
            %v658 = vld [vmem:[#allocation2 + $0x50] sm:$0xff]
            %v659 = vld [vmem:[#allocation2 + $0x58] sm:$0xff]
            %v660 = vld [vmem:[#allocation2 + $0x60] sm:$0xff]
            %v661 = vld [vmem:[#allocation2 + $0x68] sm:$0xff]
            %v662 = vld [vmem:[#allocation2 + $0x70] sm:$0xff]
            %v663 = vld [vmem:[#allocation2 + $0x78] sm:$0xff]
            %v664 = vsel %vm632, 1, 0
            %v665 = vsel %vm633, 1, 0
            %v666 = vsel %vm634, 1, 0
            %v667 = vsel %vm635, 1, 0
            %v668 = vsel %vm636, 1, 0
            %v669 = vsel %vm637, 1, 0
            %v670 = vsel %vm638, 1, 0
            %v671 = vsel %vm639, 1, 0
            %v672 = vsel %vm640, 1, 0
            %v673 = vsel %vm641, 1, 0
            %v674 = vsel %vm642, 1, 0
            %v675 = vsel %vm643, 1, 0
            %v676 = vsel %vm644, 1, 0
            %v677 = vsel %vm645, 1, 0
            %v678 = vsel %vm646, 1, 0
            %v679 = vsel %vm647, 1, 0
            %vm680 = vcmp.eq.s32.totalorder %v664, 1
            %vm681 = vcmp.eq.s32.totalorder %v665, 1
            %vm682 = vcmp.eq.s32.totalorder %v666, 1
            %vm683 = vcmp.eq.s32.totalorder %v667, 1
            %vm684 = vcmp.eq.s32.totalorder %v668, 1
            %vm685 = vcmp.eq.s32.totalorder %v669, 1
            %vm686 = vcmp.eq.s32.totalorder %v670, 1
            %vm687 = vcmp.eq.s32.totalorder %v671, 1
            %vm688 = vcmp.eq.s32.totalorder %v672, 1
            %vm689 = vcmp.eq.s32.totalorder %v673, 1
            %vm690 = vcmp.eq.s32.totalorder %v674, 1
            %vm691 = vcmp.eq.s32.totalorder %v675, 1
            %vm692 = vcmp.eq.s32.totalorder %v676, 1
            %vm693 = vcmp.eq.s32.totalorder %v677, 1
            %vm694 = vcmp.eq.s32.totalorder %v678, 1
            %vm695 = vcmp.eq.s32.totalorder %v679, 1
            %v696 = vsel %vm680, %v466, 0.0
            %v697 = vsel %vm681, %v469, 0.0
            %v698 = vsel %vm682, %v474, 0.0
            %v699 = vsel %vm683, %v477, 0.0
            %v700 = vsel %vm684, %v482, 0.0
            %v701 = vsel %vm685, %v485, 0.0
            %v702 = vsel %vm686, %v490, 0.0
            %v703 = vsel %vm687, %v493, 0.0
            %v704 = vsel %vm688, %v498, 0.0
            %v705 = vsel %vm689, %v501, 0.0
            %v706 = vsel %vm690, %v506, 0.0
            %v707 = vsel %vm691, %v509, 0.0
            %v708 = vsel %vm692, %v514, 0.0
            %v709 = vsel %vm693, %v517, 0.0
            %v710 = vsel %vm694, %v522, 0.0
            %v711 = vsel %vm695, %v525, 0.0
            %v712 = vadd.f32 %v648, %v696
            %v713 = vadd.f32 %v649, %v697
            %v714 = vadd.f32 %v650, %v698
            %v715 = vadd.f32 %v651, %v699
            %v716 = vadd.f32 %v652, %v700
            %v717 = vadd.f32 %v653, %v701
            %v718 = vadd.f32 %v654, %v702
            %v719 = vadd.f32 %v655, %v703
            %v720 = vadd.f32 %v656, %v704
            %v721 = vadd.f32 %v657, %v705
            %v722 = vadd.f32 %v658, %v706
            %v723 = vadd.f32 %v659, %v707
            %v724 = vadd.f32 %v660, %v708
            %v725 = vadd.f32 %v661, %v709
            %v726 = vadd.f32 %v662, %v710
            %v727 = vadd.f32 %v663, %v711
            %728 = vst [vmem:[#allocation2] sm:$0xff] %v712
            %729 = vst [vmem:[#allocation2 + $0x8] sm:$0xff] %v713
            %730 = vst [vmem:[#allocation2 + $0x10] sm:$0xff] %v714
            %731 = vst [vmem:[#allocation2 + $0x18] sm:$0xff] %v715
            %732 = vst [vmem:[#allocation2 + $0x20] sm:$0xff] %v716
            %733 = vst [vmem:[#allocation2 + $0x28] sm:$0xff] %v717
            %734 = vst [vmem:[#allocation2 + $0x30] sm:$0xff] %v718
            %735 = vst [vmem:[#allocation2 + $0x38] sm:$0xff] %v719
            %736 = vst [vmem:[#allocation2 + $0x40] sm:$0xff] %v720
            %737 = vst [vmem:[#allocation2 + $0x48] sm:$0xff] %v721
            %738 = vst [vmem:[#allocation2 + $0x50] sm:$0xff] %v722
            %739 = vst [vmem:[#allocation2 + $0x58] sm:$0xff] %v723
            %740 = vst [vmem:[#allocation2 + $0x60] sm:$0xff] %v724
            %741 = vst [vmem:[#allocation2 + $0x68] sm:$0xff] %v725
            %742 = vst [vmem:[#allocation2 + $0x70] sm:$0xff] %v726
            %743 = vst [vmem:[#allocation2 + $0x78] sm:$0xff] %v727
          $region52: #{tpu_custom_call.1} parent=43 // pred_fallthru
            _
        $region44: #{tpu_custom_call.1} parent=27 // pred_fallthru
          _
        %s744 = sld [smem:[#allocation7 + %s48]]
        %p745 = scmp.eq.s32.totalorder %s744, 1
        %p746 = scmp.eq.s32.totalorder %s49, 1
        %p747 = pnand %p745, %p746
        %p748 = pneg %p747
        // Predicated region
        $region53: #{tpu_custom_call.1} parent=27 // pred_check
          _
        $region54: #{tpu_custom_call.1} parent=27 // pred_check_branch
          %750 = sbr.rel (%p747) target = $region56
        $region55: #{tpu_custom_call.1} parent=27 // pred_region
          %v751 = vld [vmem:[#allocation2] sm:$0xff]
          %v752 = vld [vmem:[#allocation2 + $0x8] sm:$0xff]
          %v753 = vld [vmem:[#allocation2 + $0x10] sm:$0xff]
          %v754 = vld [vmem:[#allocation2 + $0x18] sm:$0xff]
          %v755 = vld [vmem:[#allocation2 + $0x20] sm:$0xff]
          %v756 = vld [vmem:[#allocation2 + $0x28] sm:$0xff]
          %v757 = vld [vmem:[#allocation2 + $0x30] sm:$0xff]
          %v758 = vld [vmem:[#allocation2 + $0x38] sm:$0xff]
          %v759 = vld [vmem:[#allocation2 + $0x40] sm:$0xff]
          %v760 = vld [vmem:[#allocation2 + $0x48] sm:$0xff]
          %v761 = vld [vmem:[#allocation2 + $0x50] sm:$0xff]
          %v762 = vld [vmem:[#allocation2 + $0x58] sm:$0xff]
          %v763 = vld [vmem:[#allocation2 + $0x60] sm:$0xff]
          %v764 = vld [vmem:[#allocation2 + $0x68] sm:$0xff]
          %v765 = vld [vmem:[#allocation2 + $0x70] sm:$0xff]
          %v766 = vld [vmem:[#allocation2 + $0x78] sm:$0xff]
          %767 = vst [vmem:[%s262] sm:$0xff] %v751
          %768 = vst [vmem:[%s262 + $0x8] sm:$0xff] %v752
          %769 = vst [vmem:[%s262 + $0x10] sm:$0xff] %v753
          %770 = vst [vmem:[%s262 + $0x18] sm:$0xff] %v754
          %771 = vst [vmem:[%s262 + $0x20] sm:$0xff] %v755
          %772 = vst [vmem:[%s262 + $0x28] sm:$0xff] %v756
          %773 = vst [vmem:[%s262 + $0x30] sm:$0xff] %v757
          %774 = vst [vmem:[%s262 + $0x38] sm:$0xff] %v758
          %775 = vst [vmem:[%s262 + $0x40] sm:$0xff] %v759
          %776 = vst [vmem:[%s262 + $0x48] sm:$0xff] %v760
          %777 = vst [vmem:[%s262 + $0x50] sm:$0xff] %v761
          %778 = vst [vmem:[%s262 + $0x58] sm:$0xff] %v762
          %779 = vst [vmem:[%s262 + $0x60] sm:$0xff] %v763
          %780 = vst [vmem:[%s262 + $0x68] sm:$0xff] %v764
          %781 = vst [vmem:[%s262 + $0x70] sm:$0xff] %v765
          %782 = vst [vmem:[%s262 + $0x78] sm:$0xff] %v766
        $region56: #{tpu_custom_call.1} parent=27 // pred_fallthru
          _
        %s783 = sand.u32 %s135, 1
        %s784 = scalar_lea.sflag [#allocation12], %s783
        %s785 = sand.u32 %s135, 1
        %s786 = smul.addr %s785, 128
        %s787 = scalar_lea.vmem [#allocation15], %s786
        // Predicated region
        $region57: #{tpu_custom_call.1} parent=27 // pred_check
          %p788 = pneg %p145
        $region58: #{tpu_custom_call.1} parent=27 // pred_check_branch
          %790 = sbr.rel (%p788) target = $region60
        $region59: #{tpu_custom_call.1} parent=27 // pred_region
          %s791 = sld [smem:[#allocation5 + %s48]]
          %s792 = smul.u32 16, %s791
          %s794 = ssub.s32 2048, 2048
          %795 = vsyncadd %s784, %s794
          %s796 = smul.addr %s792, 2
          %s797 = sadd.s32 %s47, %s796
          %s798 = smul.addr %s797, 128
          %s799 = scalar_lea.hbm %s8, %s798
          %s800 = sshll.u32 %s787, 4
          %s801 = int_to_ptr.vmem [resolvable:$true] %s800
          %806 = dma.vmem_to_hbm [thread:$0]  %s801, 2048, %s799, %s784, 128, 256, 8
        $region60: #{tpu_custom_call.1} parent=27 // pred_fallthru
          _
      $region28: #{tpu_custom_call.1} parent=5 // pred_fallthru
        _
      %p807 = scmp.le.s32.totalorder 2, %s37
      // Predicated region
      $region61: #{tpu_custom_call.1} parent=5 // pred_check
        %p808 = pneg %p807
      $region62: #{tpu_custom_call.1} parent=5 // pred_check_branch
        %810 = sbr.rel (%p808) target = $region64
      $region63: #{tpu_custom_call.1} parent=5 // pred_region
        %s811 = ssub.s32 %s37, 2
        // Predicated region
        $region65: #{tpu_custom_call.1} parent=63 // pred_check
          %p812 = pneg %p151
        $region66: #{tpu_custom_call.1} parent=63 // pred_check_branch
          %814 = sbr.rel (%p812) target = $region68
        $region67: #{tpu_custom_call.1} parent=63 // pred_region
          %s815 = sand.u32 %s136, 1
          %s816 = scalar_lea.sflag [#allocation12], %s815
          %s817 = sand.u32 %s136, 1
          %s818 = smul.addr %s817, 128
          %s819 = scalar_lea.vmem [#allocation15], %s818
          %820 = dma.done %s816, 2048
        $region68: #{tpu_custom_call.1} parent=63 // pred_fallthru
          _
      $region64: #{tpu_custom_call.1} parent=5 // pred_fallthru
        _
    $region6: #{tpu_custom_call.1} parent=1 // loop_footer
      %s41 = sadd.s32 1, %s37
    $region7: #{tpu_custom_call.1} parent=1 // loop_footer_branch
      %36 = sbr.rel target = $region3
    $region8: #{tpu_custom_call.1} parent=1 // loop_exit
      _
    %821 = vsyncpa [#allocation11], 1
    %s822 = scalar_lea.sflag [#allocation11], 1
    %823 = vsyncpa %s822, 1
    %824 = vsyncpa [#allocation14], 1
    %s825 = scalar_lea.sflag [#allocation14], 1
    %826 = vsyncpa %s825, 1
    %827 = vsyncpa [#allocation12], 1
    %s828 = scalar_lea.sflag [#allocation12], 1
    %829 = vsyncpa %s828, 1

</llo_original>
